<compile_context>
chip_gen: v6e
topology: v6e:2x2x1
jax: 0.10.0
libtpu: 0.0.40
codegen_flags: <defaults>
</compile_context>

<pallas_src>
import jax
import jax.numpy as jnp
from jax.experimental import pallas as pl
from jax.experimental.pallas import tpu as pltpu


def _rope_kernel(x_ref, cos_ref, sin_n_ref, sin_p_ref, o_ref):
    # x_ref/o_ref: (tB, tS, D); cos/sin refs: (tS, D) f32 (broadcast over batch).
    xn = x_ref[...]                       # native dtype (f32 or bf16)
    d = xn.shape[-1]
    lane_axis = xn.ndim - 1
    # Adjacent (real, imag) partners via XLU rotations in the native dtype; the
    # wrap-around lanes are multiplied by the zeroed table entries, so no
    # lane-parity select is needed.
    from_next = pltpu.roll(xn, shift=d - 1, axis=lane_axis).astype(jnp.float32)
    from_prev = pltpu.roll(xn, shift=1, axis=lane_axis).astype(jnp.float32)
    x = xn.astype(jnp.float32)
    cos = cos_ref[...][None]
    sn = sin_n_ref[...][None]
    sp = sin_p_ref[...][None]
    o_ref[...] = (x * cos + from_next * sn + from_prev * sp).astype(o_ref.dtype)


def _vmem_budget():
    """Per-generation scoped-VMEM limit and block budget (bytes)."""
    try:
        cap = int(getattr(pltpu.get_tpu_info(), "vmem_capacity_bytes",
                          64 * 1024 * 1024))
    except Exception:
        cap = 64 * 1024 * 1024
    # Stay inside physical per-core VMEM (64 MiB v7x / 128 MiB v5e-v6e) but well
    # above the 16/32 MiB default scoped limits.
    limit = min((cap * 3) // 4, 96 * 1024 * 1024)
    # Leave headroom for compiler-internal scratch; cap the block budget — a
    # ~40 MiB working set already amortizes the ~0.35 us per-grid-step overhead.
    budget = min(limit - 8 * 1024 * 1024, 48 * 1024 * 1024)
    return limit, budget


def _choose_tiles(B, S, D, x_itemsize, out_itemsize, block_budget, seq_tile=None):
    """Pick (tB, tS).  Tables are single-buffered, x/out double-buffered."""
    if seq_tile is not None:              # explicit override (used for testing)
        return 1, min(S, int(seq_tile))
    table_row = 3 * D * 4                                 # cos + 2 sin, f32, 1 buffer
    data_row = 2 * D * (x_itemsize + out_itemsize)        # x + out, 2 buffers
    if S * (table_row + data_row) <= block_budget:
        # Whole sequence fits: grow the batch tile (decode-style small-S shapes).
        spare = block_budget - S * table_row
        tB = max(1, min(B, spare // max(1, S * data_row)))
        return int(tB), S
    rows = block_budget // (table_row + data_row)
    tS = (rows // 32) * 32                # multiple of 32: safe for f32/bf16/int8
    tS = max(32, min(int(tS), S))
    return 1, tS


def make_rope(seq_len, d_model, base=10000.0):
    """Returns (rotations, apply_fn). `rotations` is the (seq_len, d_model)
    interleaved [cos, sin] buffer, identical to the PyTorch register_buffer."""
    assert d_model % 2 == 0
    k_max = d_model // 2
    theta = 1.0 / (base ** (jnp.arange(k_max, dtype=jnp.float32) / k_max))
    angles = jnp.arange(seq_len, dtype=jnp.float32)[:, None] * theta[None, :]
    cos = jnp.cos(angles)
    sin = jnp.sin(angles)
    rotations = jnp.stack([cos, sin], axis=-1).reshape(seq_len, d_model)
    # Pre-masked interleaved tables for the fused kernel (computed once, tiny).
    cos_il = jnp.repeat(cos, 2, axis=-1)
    sin_next = jnp.stack([-sin, jnp.zeros_like(sin)], axis=-1).reshape(seq_len, d_model)
    sin_prev = jnp.stack([jnp.zeros_like(sin), sin], axis=-1).reshape(seq_len, d_model)

    vmem_limit, block_budget = _vmem_budget()

    def apply(x, out_dtype=None, seq_tile=None):
        B, S, D = x.shape
        assert D == d_model and S <= seq_len
        out_dtype = jnp.float32 if out_dtype is None else jnp.dtype(out_dtype)
        x_it = jnp.dtype(x.dtype).itemsize
        o_it = jnp.dtype(out_dtype).itemsize
        tB, tS = _choose_tiles(B, S, D, x_it, o_it, block_budget, seq_tile)
        nS = pl.cdiv(S, tS)
        nB = pl.cdiv(B, tB)
        cos_s, sn_s, sp_s = cos_il[:S], sin_next[:S], sin_prev[:S]
        cost = pl.CostEstimate(
            flops=5 * B * S * D,
            transcendentals=0,
            bytes_accessed=B * S * D * (x_it + o_it) + 3 * S * D * 4,
        )

        def run(single_buffer_tables):
            tbl_kw = (dict(pipeline_mode=pl.Buffered(1))
                      if single_buffer_tables else {})
            return pl.pallas_call(
                _rope_kernel,
                out_shape=jax.ShapeDtypeStruct((B, S, D), out_dtype),
                grid_spec=pltpu.PrefetchScalarGridSpec(
                    num_scalar_prefetch=0,
                    grid=(nS, nB),
                    in_specs=[
                        pl.BlockSpec((tB, tS, D), lambda si, bi: (bi, si, 0)),
                        # Table blocks change only with the outer S axis; a
                        # single buffer frees VMEM for larger x/out tiles.
                        pl.BlockSpec((tS, D), lambda si, bi: (si, 0), **tbl_kw),
                        pl.BlockSpec((tS, D), lambda si, bi: (si, 0), **tbl_kw),
                        pl.BlockSpec((tS, D), lambda si, bi: (si, 0), **tbl_kw),
                    ],
                    out_specs=pl.BlockSpec((tB, tS, D),
                                           lambda si, bi: (bi, si, 0)),
                ),
                compiler_params=pltpu.CompilerParams(
                    dimension_semantics=("parallel", "parallel"),
                    vmem_limit_bytes=vmem_limit),
                cost_estimate=cost,
            )(x, cos_s, sn_s, sp_s)

        try:
            return run(True)
        except Exception:
            # Fallback if single-buffered tables are rejected by this jax build.
            return run(False)

    return rotations, apply


def _rope_reference(x, rotations):
    """Pure-JAX reference mirroring the PyTorch forward (complex multiply)."""
    x = x.astype(jnp.float32)
    B, S, D = x.shape
    rot = rotations[:S]
    rot_c = rot.reshape(S, D // 2, 2)
    x_c = x.reshape(B, S, D // 2, 2)
    cr, ci = rot_c[..., 0][None], rot_c[..., 1][None]
    xr, xi = x_c[..., 0], x_c[..., 1]
    out_r = cr * xr - ci * xi
    out_i = cr * xi + ci * xr
    return jnp.stack([out_r, out_i], axis=-1).reshape(B, S, D)


if __name__ == "__main__":
    batch, seq_len, d_model = 2, 8, 32
    rotations, rope_apply = make_rope(seq_len, d_model)

    key = jax.random.PRNGKey(0)
    x = jax.random.normal(key, (batch, seq_len, d_model), dtype=jnp.float32)

    out = jax.block_until_ready(rope_apply(x))
    ref = _rope_reference(x, rotations)
    assert out.shape == (batch, seq_len, d_model)
    assert out.dtype == jnp.float32
    assert jnp.allclose(out, ref, atol=1e-5, rtol=1e-5)

    # bf16 input: DMA'd as bf16, upcast in-register; f32 output (module contract).
    x_bf16 = x.astype(jnp.bfloat16)
    out_b = jax.block_until_ready(rope_apply(x_bf16))
    ref_b = _rope_reference(x_bf16, rotations)
    assert out_b.dtype == jnp.float32
    assert jnp.allclose(out_b, ref_b, atol=1e-5, rtol=1e-5)

    # Opt-in bf16 output knob (halves write traffic; looser tolerance).
    out_bf = jax.block_until_ready(rope_apply(x_bf16, out_dtype=jnp.bfloat16))
    assert out_bf.dtype == jnp.bfloat16
    assert jnp.allclose(out_bf.astype(jnp.float32), ref_b, atol=5e-2, rtol=5e-2)

    # Ragged last S tile (S % tS != 0) with a forced small seq tile and
    # lane-dense D=128 — exercises the padded-block clipping path.
    rot2, rope2 = make_rope(64, 128)
    x2 = jax.random.normal(jax.random.PRNGKey(1), (2, 40, 128), dtype=jnp.float32)
    out2 = jax.block_until_ready(rope2(x2, seq_tile=32))
    ref2 = _rope_reference(x2, rot2)
    assert out2.shape == (2, 40, 128)
    assert jnp.allclose(out2, ref2, atol=1e-5, rtol=1e-5)

    print("KERNEL_OK")
</pallas_src>

<mosaic_0001>
module attributes {stable_mosaic.version = 11 : i64} {
  func.func @_rope_kernel(%arg0: i32, %arg1: i32, %arg2: memref<2x8x32xf32, #tpu.memory_space<vmem>>, %arg3: memref<8x32xf32, #tpu.memory_space<vmem>>, %arg4: memref<8x32xf32, #tpu.memory_space<vmem>>, %arg5: memref<8x32xf32, #tpu.memory_space<vmem>>, %arg6: memref<2x8x32xf32, #tpu.memory_space<vmem>>) attributes {dimension_semantics = [#tpu.dimension_semantics<parallel>, #tpu.dimension_semantics<parallel>], iteration_bounds = array<i64: 1, 1>, scalar_prefetch = 0 : i64, scratch_operands = 0 : i64, tpu.core_type = #tpu.core_type<tc>, window_params = [{transform_indices = @transform_0, window_bounds = array<i64: 2, 8, 32>}, {pipeline_mode = #tpu.pipeline_mode<synchronous>, transform_indices = @transform_1, window_bounds = array<i64: 8, 32>}, {pipeline_mode = #tpu.pipeline_mode<synchronous>, transform_indices = @transform_2, window_bounds = array<i64: 8, 32>}, {pipeline_mode = #tpu.pipeline_mode<synchronous>, transform_indices = @transform_3, window_bounds = array<i64: 8, 32>}, {transform_indices = @transform_4, window_bounds = array<i64: 2, 8, 32>}]} {
    %c0 = arith.constant 0 : index
    %c0_0 = arith.constant 0 : index
    %c0_1 = arith.constant 0 : index
    %0 = vector.load %arg2[%c0, %c0_0, %c0_1] : memref<2x8x32xf32, #tpu.memory_space<vmem>>, vector<2x8x32xf32>
    %c31_i32 = arith.constant 31 : i32
    %1 = tpu.dynamic_rotate %0 by %c31_i32 dim 2 : vector<2x8x32xf32>, i32 -> vector<2x8x32xf32>
    %c1_i32 = arith.constant 1 : i32
    %2 = tpu.dynamic_rotate %0 by %c1_i32 dim 2 : vector<2x8x32xf32>, i32 -> vector<2x8x32xf32>
    %c0_2 = arith.constant 0 : index
    %c0_3 = arith.constant 0 : index
    %3 = vector.load %arg3[%c0_2, %c0_3] : memref<8x32xf32, #tpu.memory_space<vmem>>, vector<8x32xf32>
    %4 = vector.shape_cast %3 : vector<8x32xf32> to vector<1x8x32xf32>
    %c0_4 = arith.constant 0 : index
    %c0_5 = arith.constant 0 : index
    %5 = vector.load %arg4[%c0_4, %c0_5] : memref<8x32xf32, #tpu.memory_space<vmem>>, vector<8x32xf32>
    %6 = vector.shape_cast %5 : vector<8x32xf32> to vector<1x8x32xf32>
    %c0_6 = arith.constant 0 : index
    %c0_7 = arith.constant 0 : index
    %7 = vector.load %arg5[%c0_6, %c0_7] : memref<8x32xf32, #tpu.memory_space<vmem>>, vector<8x32xf32>
    %8 = vector.shape_cast %7 : vector<8x32xf32> to vector<1x8x32xf32>
    %9 = vector.broadcast %4 : vector<1x8x32xf32> to vector<2x8x32xf32>
    %10 = arith.mulf %0, %9 : vector<2x8x32xf32>
    %11 = vector.broadcast %6 : vector<1x8x32xf32> to vector<2x8x32xf32>
    %12 = arith.mulf %1, %11 : vector<2x8x32xf32>
    %13 = arith.addf %10, %12 : vector<2x8x32xf32>
    %14 = vector.broadcast %8 : vector<1x8x32xf32> to vector<2x8x32xf32>
    %15 = arith.mulf %2, %14 : vector<2x8x32xf32>
    %16 = arith.addf %13, %15 : vector<2x8x32xf32>
    %c0_8 = arith.constant 0 : index
    %c0_9 = arith.constant 0 : index
    %c0_10 = arith.constant 0 : index
    %17 = vector.load %arg6[%c0_8, %c0_9, %c0_10] : memref<2x8x32xf32, #tpu.memory_space<vmem>>, vector<2x8x32xf32>
    tpu.vector_store %arg6[%c0_8, %c0_9, %c0_10], %16 {strides = array<i32>} : memref<2x8x32xf32, #tpu.memory_space<vmem>>, vector<2x8x32xf32>,
    return
  }
  func.func @transform_0(%arg0: i32, %arg1: i32) -> (i32, i32, i32) {
    %c0_i32 = arith.constant 0 : i32
    %c0_i32_0 = arith.constant 0 : i32
    return %arg1, %arg0, %c0_i32 : i32, i32, i32
  }
  func.func @transform_1(%arg0: i32, %arg1: i32) -> (i32, i32) {
    %c0_i32 = arith.constant 0 : i32
    %c0_i32_0 = arith.constant 0 : i32
    return %arg0, %c0_i32 : i32, i32
  }
  func.func @transform_2(%arg0: i32, %arg1: i32) -> (i32, i32) {
    %c0_i32 = arith.constant 0 : i32
    %c0_i32_0 = arith.constant 0 : i32
    return %arg0, %c0_i32 : i32, i32
  }
  func.func @transform_3(%arg0: i32, %arg1: i32) -> (i32, i32) {
    %c0_i32 = arith.constant 0 : i32
    %c0_i32_0 = arith.constant 0 : i32
    return %arg0, %c0_i32 : i32, i32
  }
  func.func @transform_4(%arg0: i32, %arg1: i32) -> (i32, i32, i32) {
    %c0_i32 = arith.constant 0 : i32
    %c0_i32_0 = arith.constant 0 : i32
    return %arg1, %arg0, %c0_i32 : i32, i32, i32
  }
}

module attributes {stable_mosaic.version = 11 : i64} {
  func.func @_rope_kernel(%arg0: i32, %arg1: i32, %arg2: memref<2x8x32xf32, #tpu.memory_space<vmem>>, %arg3: memref<8x32xf32, #tpu.memory_space<vmem>>, %arg4: memref<8x32xf32, #tpu.memory_space<vmem>>, %arg5: memref<8x32xf32, #tpu.memory_space<vmem>>, %arg6: memref<2x8x32xf32, #tpu.memory_space<vmem>>) attributes {dimension_semantics = [#tpu.dimension_semantics<parallel>, #tpu.dimension_semantics<parallel>], iteration_bounds = array<i64: 1, 1>, scalar_prefetch = 0 : i64, scratch_operands = 0 : i64, tpu.core_type = #tpu.core_type<tc>, window_params = [{transform_indices = @transform_0, window_bounds = array<i64: 2, 8, 32>}, {transform_indices = @transform_1, window_bounds = array<i64: 8, 32>}, {transform_indices = @transform_2, window_bounds = array<i64: 8, 32>}, {transform_indices = @transform_3, window_bounds = array<i64: 8, 32>}, {transform_indices = @transform_4, window_bounds = array<i64: 2, 8, 32>}]} {
    %c0 = arith.constant 0 : index
    %c0_0 = arith.constant 0 : index
    %c0_1 = arith.constant 0 : index
    %0 = vector.load %arg2[%c0, %c0_0, %c0_1] : memref<2x8x32xf32, #tpu.memory_space<vmem>>, vector<2x8x32xf32>
    %c31_i32 = arith.constant 31 : i32
    %1 = tpu.dynamic_rotate %0 by %c31_i32 dim 2 : vector<2x8x32xf32>, i32 -> vector<2x8x32xf32>
    %c1_i32 = arith.constant 1 : i32
    %2 = tpu.dynamic_rotate %0 by %c1_i32 dim 2 : vector<2x8x32xf32>, i32 -> vector<2x8x32xf32>
    %c0_2 = arith.constant 0 : index
    %c0_3 = arith.constant 0 : index
    %3 = vector.load %arg3[%c0_2, %c0_3] : memref<8x32xf32, #tpu.memory_space<vmem>>, vector<8x32xf32>
    %4 = vector.shape_cast %3 : vector<8x32xf32> to vector<1x8x32xf32>
    %c0_4 = arith.constant 0 : index
    %c0_5 = arith.constant 0 : index
    %5 = vector.load %arg4[%c0_4, %c0_5] : memref<8x32xf32, #tpu.memory_space<vmem>>, vector<8x32xf32>
    %6 = vector.shape_cast %5 : vector<8x32xf32> to vector<1x8x32xf32>
    %c0_6 = arith.constant 0 : index
    %c0_7 = arith.constant 0 : index
    %7 = vector.load %arg5[%c0_6, %c0_7] : memref<8x32xf32, #tpu.memory_space<vmem>>, vector<8x32xf32>
    %8 = vector.shape_cast %7 : vector<8x32xf32> to vector<1x8x32xf32>
    %9 = vector.broadcast %4 : vector<1x8x32xf32> to vector<2x8x32xf32>
    %10 = arith.mulf %0, %9 : vector<2x8x32xf32>
    %11 = vector.broadcast %6 : vector<1x8x32xf32> to vector<2x8x32xf32>
    %12 = arith.mulf %1, %11 : vector<2x8x32xf32>
    %13 = arith.addf %10, %12 : vector<2x8x32xf32>
    %14 = vector.broadcast %8 : vector<1x8x32xf32> to vector<2x8x32xf32>
    %15 = arith.mulf %2, %14 : vector<2x8x32xf32>
    %16 = arith.addf %13, %15 : vector<2x8x32xf32>
    %c0_8 = arith.constant 0 : index
    %c0_9 = arith.constant 0 : index
    %c0_10 = arith.constant 0 : index
    %17 = vector.load %arg6[%c0_8, %c0_9, %c0_10] : memref<2x8x32xf32, #tpu.memory_space<vmem>>, vector<2x8x32xf32>
    tpu.vector_store %arg6[%c0_8, %c0_9, %c0_10], %16 {strides = array<i32>} : memref<2x8x32xf32, #tpu.memory_space<vmem>>, vector<2x8x32xf32>,
    return
  }
  func.func @transform_0(%arg0: i32, %arg1: i32) -> (i32, i32, i32) {
    %c0_i32 = arith.constant 0 : i32
    %c0_i32_0 = arith.constant 0 : i32
    return %arg1, %arg0, %c0_i32 : i32, i32, i32
  }
  func.func @transform_1(%arg0: i32, %arg1: i32) -> (i32, i32) {
    %c0_i32 = arith.constant 0 : i32
    %c0_i32_0 = arith.constant 0 : i32
    return %arg0, %c0_i32 : i32, i32
  }
  func.func @transform_2(%arg0: i32, %arg1: i32) -> (i32, i32) {
    %c0_i32 = arith.constant 0 : i32
    %c0_i32_0 = arith.constant 0 : i32
    return %arg0, %c0_i32 : i32, i32
  }
  func.func @transform_3(%arg0: i32, %arg1: i32) -> (i32, i32) {
    %c0_i32 = arith.constant 0 : i32
    %c0_i32_0 = arith.constant 0 : i32
    return %arg0, %c0_i32 : i32, i32
  }
  func.func @transform_4(%arg0: i32, %arg1: i32) -> (i32, i32, i32) {
    %c0_i32 = arith.constant 0 : i32
    %c0_i32_0 = arith.constant 0 : i32
    return %arg1, %arg0, %c0_i32 : i32, i32, i32
  }
}

</mosaic_0001>

<llo_original>
// kernel: tpu_custom_call.1
$region0: #{tpu_custom_call.1}
  #allocation0 [shape = 'u32[]', space=smem, size = 0x4, offset = 0x4, fixed_abs, tag = 'smem constant byte address 0x4 - core index']
  #allocation1 [shape = 'u32[144,128]{1,0:T(1,128)}', space=vmem, size = 0x12000, scoped, tag = 'internal scratch']
  %s0 = inlined_call_operand.hbm [shape: f32[2,8,32], index: 0, kind: input, shape index: {}]
  %s1 = inlined_call_operand.hbm [shape: f32[8,32], index: 1, kind: input, shape index: {}]
  %s2 = inlined_call_operand.hbm [shape: f32[8,32], index: 2, kind: input, shape index: {}]
  %s3 = inlined_call_operand.hbm [shape: f32[8,32], index: 3, kind: input, shape index: {}]
  %s4 = inlined_call_operand.hbm [shape: f32[2,8,32], index: 4, kind: output, shape index: {}]
  %s5 = sld [smem:[#allocation0]]
  $region42: #{tpu_custom_call.1} parent=0
    _
  %s7 = ssub.s32 1, %s5
  %s8 = scalar_select 0, %s7, %s5
  $region1: #{tpu_custom_call.1} parent=0
    #allocation2 [shape = 'u8[8192]{0}', space=vmem, size = 0x2000, scoped, tag = 'input window, operand 0, single buffered']
    #allocation3 [shape = 's32[1]{0}', space=sflag, size = 0x4, scoped, tag = 'scoped memory for tpu_custom_call.1']
    #allocation4 [shape = 's32[1]{0}', space=sflag, size = 0x4, scoped, tag = 'scoped memory for tpu_custom_call.1']
    #allocation5 [shape = 'u8[4096]{0}', space=vmem, size = 0x1000, scoped, tag = 'input window, operand 1, single buffered']
    #allocation6 [shape = 's32[1]{0}', space=sflag, size = 0x4, scoped, tag = 'scoped memory for tpu_custom_call.1']
    #allocation7 [shape = 'u8[4096]{0}', space=vmem, size = 0x1000, scoped, tag = 'input window, operand 2, single buffered']
    #allocation8 [shape = 'u8[4096]{0}', space=vmem, size = 0x1000, scoped, tag = 'input window, operand 3, single buffered']
    #allocation9 [shape = 's32[1]{0}', space=sflag, size = 0x4, scoped, tag = 'scoped memory for tpu_custom_call.1']
    #allocation10 [shape = 'u8[8192]{0}', space=vmem, size = 0x2000, scoped, tag = 'output window, operand 0, single buffered']
    %9 = vsyncpa [#allocation3], 0
    %10 = vsyncpa [#allocation6], 0
    %11 = vsyncpa [#allocation9], 0
    %12 = vsyncpa [#allocation4], 0
    // Predicated region
    $region2: #{tpu_custom_call.1} parent=1 // pred_check
      _
    $region3: #{tpu_custom_call.1} parent=1 // pred_check_branch
      %14 = sbr.rel (0) target = $region5
    $region4: #{tpu_custom_call.1} parent=1 // pred_region
      %s16 = ssub.s32 256, 256
      %17 = vsyncadd [#allocation3], %s16
      %s18 = sshll.u32 [#allocation2], 4
      %s19 = int_to_ptr.vmem [resolvable:$true] %s18
      %24 = dma.hbm_to_vmem [thread:$0]  %s0, 256, %s19, [#allocation3], 128, 128, 8
    $region5: #{tpu_custom_call.1} parent=1 // pred_fallthru
      _
    // Predicated region
    $region6: #{tpu_custom_call.1} parent=1 // pred_check
      _
    $region7: #{tpu_custom_call.1} parent=1 // pred_check_branch
      %26 = sbr.rel (0) target = $region9
    $region8: #{tpu_custom_call.1} parent=1 // pred_region
      %s28 = ssub.s32 128, 128
      %29 = vsyncadd [#allocation6], %s28
      %s31 = sshll.u32 [#allocation5], 4
      %s32 = int_to_ptr.vmem [resolvable:$true] %s31
      %34 = dma.hbm_to_vmem [thread:$0]  %s1, 128, %s32, [#allocation6]
    $region9: #{tpu_custom_call.1} parent=1 // pred_fallthru
      _
    // Predicated region
    $region10: #{tpu_custom_call.1} parent=1 // pred_check
      _
    $region11: #{tpu_custom_call.1} parent=1 // pred_check_branch
      %36 = sbr.rel (0) target = $region13
    $region12: #{tpu_custom_call.1} parent=1 // pred_region
      %s38 = ssub.s32 128, 128
      %39 = vsyncadd [#allocation6], %s38
      %s41 = sshll.u32 [#allocation7], 4
      %s42 = int_to_ptr.vmem [resolvable:$true] %s41
      %44 = dma.hbm_to_vmem [thread:$0]  %s2, 128, %s42, [#allocation6]
    $region13: #{tpu_custom_call.1} parent=1 // pred_fallthru
      _
    // Predicated region
    $region14: #{tpu_custom_call.1} parent=1 // pred_check
      _
    $region15: #{tpu_custom_call.1} parent=1 // pred_check_branch
      %46 = sbr.rel (0) target = $region17
    $region16: #{tpu_custom_call.1} parent=1 // pred_region
      %s48 = ssub.s32 128, 128
      %49 = vsyncadd [#allocation9], %s48
      %s51 = sshll.u32 [#allocation8], 4
      %s52 = int_to_ptr.vmem [resolvable:$true] %s51
      %54 = dma.hbm_to_vmem [thread:$0]  %s3, 128, %s52, [#allocation9]
    $region17: #{tpu_custom_call.1} parent=1 // pred_fallthru
      _
    // Predicated region
    $region18: #{tpu_custom_call.1} parent=1 // pred_check
      _
    $region19: #{tpu_custom_call.1} parent=1 // pred_check_branch
      %56 = sbr.rel (0) target = $region21
    $region20: #{tpu_custom_call.1} parent=1 // pred_region
      %57 = dma.done [#allocation3], 256
    $region21: #{tpu_custom_call.1} parent=1 // pred_fallthru
      _
    // Predicated region
    $region22: #{tpu_custom_call.1} parent=1 // pred_check
      _
    $region23: #{tpu_custom_call.1} parent=1 // pred_check_branch
      %59 = sbr.rel (0) target = $region25
    $region24: #{tpu_custom_call.1} parent=1 // pred_region
      %60 = dma.done [#allocation6], 128
    $region25: #{tpu_custom_call.1} parent=1 // pred_fallthru
      _
    // Predicated region
    $region26: #{tpu_custom_call.1} parent=1 // pred_check
      _
    $region27: #{tpu_custom_call.1} parent=1 // pred_check_branch
      %62 = sbr.rel (0) target = $region29
    $region28: #{tpu_custom_call.1} parent=1 // pred_region
      %63 = dma.done [#allocation6], 128
    $region29: #{tpu_custom_call.1} parent=1 // pred_fallthru
      _
    // Predicated region
    $region30: #{tpu_custom_call.1} parent=1 // pred_check
      _
    $region31: #{tpu_custom_call.1} parent=1 // pred_check_branch
      %65 = sbr.rel (0) target = $region33
    $region32: #{tpu_custom_call.1} parent=1 // pred_region
      %66 = dma.done [#allocation9], 128
    $region33: #{tpu_custom_call.1} parent=1 // pred_fallthru
      _
    %v67 = vld [vmem:[#allocation2] sm:$0xff]
    %v68 = vld [vmem:[#allocation2 + $0x8] sm:$0xff]
    %vm69 = vcmask 1047808
    %70 = vrot.lane.b32.xlu0 %v67, 32
    %v71 = vpop.permute.xlu0 %70
    %v72 = vsel %vm69, %v71, %v67
    %73 = vrot.lane.b32.xlu0 %v68, 32
    %v74 = vpop.permute.xlu0 %73
    %v75 = vsel %vm69, %v74, %v68
    %76 = vrot.lane.b32.xlu0 %v72, 32
    %v77 = vpop.permute.xlu0 %76
    %78 = vrot.lane.b32.xlu0 %v75, 32
    %v79 = vpop.permute.xlu0 %78
    %v80 = vsel %vm69, %v77, %v67
    %v81 = vsel %vm69, %v79, %v68
    %v82 = vld [vmem:[#allocation5] sm:$0xff]
    %v83 = vld [vmem:[#allocation7] sm:$0xff]
    %v84 = vld [vmem:[#allocation8] sm:$0xff]
    %v85 = vmul.f32 %v67, %v82
    %v86 = vmul.f32 %v68, %v82
    %88 = vrot.lane.b32.xlu0 %v83, 1
    %v89 = vpop.permute.xlu0 %88
    %v91 = vmul.f32 %v80, %v89
    %v92 = vmul.f32 %v81, %v89
    %95 = vrot.lane.b32.xlu0 %v91, 127
    %v96 = vpop.permute.xlu0 %95
    %97 = vrot.lane.b32.xlu0 %v92, 127
    %v98 = vpop.permute.xlu0 %97
    %v101 = vadd.f32 %v85, %v96
    %v102 = vadd.f32 %v86, %v98
    %104 = vrot.lane.b32.xlu0 %v84, 31
    %v105 = vpop.permute.xlu0 %104
    %v107 = vmul.f32 %v80, %v105
    %v108 = vmul.f32 %v81, %v105
    %111 = vrot.lane.b32.xlu0 %v107, 97
    %v112 = vpop.permute.xlu0 %111
    %113 = vrot.lane.b32.xlu0 %v108, 97
    %v114 = vpop.permute.xlu0 %113
    %v117 = vadd.f32 %v101, %v112
    %v118 = vadd.f32 %v102, %v114
    %vm119 = vcmask 261120
    %120 = vst.msk [vmem:[#allocation10] sm:$0xff] %vm119, %v117
    %121 = vst.msk [vmem:[#allocation10 + $0x8] sm:$0xff] %vm119, %v118
    // Predicated region
    $region34: #{tpu_custom_call.1} parent=1 // pred_check
      _
    $region35: #{tpu_custom_call.1} parent=1 // pred_check_branch
      %123 = sbr.rel (0) target = $region37
    $region36: #{tpu_custom_call.1} parent=1 // pred_region
      %s125 = ssub.s32 256, 256
      %126 = vsyncadd [#allocation4], %s125
      %s127 = sshll.u32 [#allocation10], 4
      %s128 = int_to_ptr.vmem [resolvable:$true] %s127
      %133 = dma.vmem_to_hbm [thread:$0]  %s128, 256, %s4, [#allocation4], 128, 128, 8
    $region37: #{tpu_custom_call.1} parent=1 // pred_fallthru
      _
    // Predicated region
    $region38: #{tpu_custom_call.1} parent=1 // pred_check
      _
    $region39: #{tpu_custom_call.1} parent=1 // pred_check_branch
      %135 = sbr.rel (0) target = $region41
    $region40: #{tpu_custom_call.1} parent=1 // pred_region
      %136 = dma.done [#allocation4], 256
    $region41: #{tpu_custom_call.1} parent=1 // pred_fallthru
      _
    %137 = vsyncpa [#allocation3], 1
    %138 = vsyncpa [#allocation6], 1
    %139 = vsyncpa [#allocation9], 1
    %140 = vsyncpa [#allocation4], 1

// kernel: tpu_custom_call.1
$region0: #{tpu_custom_call.1}
  #allocation0 [shape = 'u32[]', space=smem, size = 0x4, offset = 0x4, fixed_abs, tag = 'smem constant byte address 0x4 - core index']
  #allocation1 [shape = 'u32[144,128]{1,0:T(1,128)}', space=vmem, size = 0x12000, scoped, tag = 'internal scratch']
  %s0 = inlined_call_operand.hbm [shape: f32[2,8,32], index: 0, kind: input, shape index: {}]
  %s1 = inlined_call_operand.hbm [shape: f32[8,32], index: 1, kind: input, shape index: {}]
  %s2 = inlined_call_operand.hbm [shape: f32[8,32], index: 2, kind: input, shape index: {}]
  %s3 = inlined_call_operand.hbm [shape: f32[8,32], index: 3, kind: input, shape index: {}]
  %s4 = inlined_call_operand.hbm [shape: f32[2,8,32], index: 4, kind: output, shape index: {}]
  %s5 = sld [smem:[#allocation0]]
  $region42: #{tpu_custom_call.1} parent=0
    _
  %s7 = ssub.s32 1, %s5
  %s8 = scalar_select 0, %s7, %s5
  $region1: #{tpu_custom_call.1} parent=0
    #allocation2 [shape = 'u8[8192]{0}', space=vmem, size = 0x2000, scoped, tag = 'input window, operand 0, single buffered']
    #allocation3 [shape = 's32[1]{0}', space=sflag, size = 0x4, scoped, tag = 'scoped memory for tpu_custom_call.1']
    #allocation4 [shape = 's32[1]{0}', space=sflag, size = 0x4, scoped, tag = 'scoped memory for tpu_custom_call.1']
    #allocation5 [shape = 'u8[4096]{0}', space=vmem, size = 0x1000, scoped, tag = 'input window, operand 1, single buffered']
    #allocation6 [shape = 's32[1]{0}', space=sflag, size = 0x4, scoped, tag = 'scoped memory for tpu_custom_call.1']
    #allocation7 [shape = 'u8[4096]{0}', space=vmem, size = 0x1000, scoped, tag = 'input window, operand 2, single buffered']
    #allocation8 [shape = 'u8[4096]{0}', space=vmem, size = 0x1000, scoped, tag = 'input window, operand 3, single buffered']
    #allocation9 [shape = 's32[1]{0}', space=sflag, size = 0x4, scoped, tag = 'scoped memory for tpu_custom_call.1']
    #allocation10 [shape = 'u8[8192]{0}', space=vmem, size = 0x2000, scoped, tag = 'output window, operand 0, single buffered']
    %9 = vsyncpa [#allocation3], 0
    %10 = vsyncpa [#allocation6], 0
    %11 = vsyncpa [#allocation9], 0
    %12 = vsyncpa [#allocation4], 0
    // Predicated region
    $region2: #{tpu_custom_call.1} parent=1 // pred_check
      _
    $region3: #{tpu_custom_call.1} parent=1 // pred_check_branch
      %14 = sbr.rel (0) target = $region5
    $region4: #{tpu_custom_call.1} parent=1 // pred_region
      %s16 = ssub.s32 256, 256
      %17 = vsyncadd [#allocation3], %s16
      %s18 = sshll.u32 [#allocation2], 4
      %s19 = int_to_ptr.vmem [resolvable:$true] %s18
      %24 = dma.hbm_to_vmem [thread:$0]  %s0, 256, %s19, [#allocation3], 128, 128, 8
    $region5: #{tpu_custom_call.1} parent=1 // pred_fallthru
      _
    // Predicated region
    $region6: #{tpu_custom_call.1} parent=1 // pred_check
      _
    $region7: #{tpu_custom_call.1} parent=1 // pred_check_branch
      %26 = sbr.rel (0) target = $region9
    $region8: #{tpu_custom_call.1} parent=1 // pred_region
      %s28 = ssub.s32 128, 128
      %29 = vsyncadd [#allocation6], %s28
      %s31 = sshll.u32 [#allocation5], 4
      %s32 = int_to_ptr.vmem [resolvable:$true] %s31
      %34 = dma.hbm_to_vmem [thread:$0]  %s1, 128, %s32, [#allocation6]
    $region9: #{tpu_custom_call.1} parent=1 // pred_fallthru
      _
    // Predicated region
    $region10: #{tpu_custom_call.1} parent=1 // pred_check
      _
    $region11: #{tpu_custom_call.1} parent=1 // pred_check_branch
      %36 = sbr.rel (0) target = $region13
    $region12: #{tpu_custom_call.1} parent=1 // pred_region
      %s38 = ssub.s32 128, 128
      %39 = vsyncadd [#allocation6], %s38
      %s41 = sshll.u32 [#allocation7], 4
      %s42 = int_to_ptr.vmem [resolvable:$true] %s41
      %44 = dma.hbm_to_vmem [thread:$0]  %s2, 128, %s42, [#allocation6]
    $region13: #{tpu_custom_call.1} parent=1 // pred_fallthru
      _
    // Predicated region
    $region14: #{tpu_custom_call.1} parent=1 // pred_check
      _
    $region15: #{tpu_custom_call.1} parent=1 // pred_check_branch
      %46 = sbr.rel (0) target = $region17
    $region16: #{tpu_custom_call.1} parent=1 // pred_region
      %s48 = ssub.s32 128, 128
      %49 = vsyncadd [#allocation9], %s48
      %s51 = sshll.u32 [#allocation8], 4
      %s52 = int_to_ptr.vmem [resolvable:$true] %s51
      %54 = dma.hbm_to_vmem [thread:$0]  %s3, 128, %s52, [#allocation9]
    $region17: #{tpu_custom_call.1} parent=1 // pred_fallthru
      _
    // Predicated region
    $region18: #{tpu_custom_call.1} parent=1 // pred_check
      _
    $region19: #{tpu_custom_call.1} parent=1 // pred_check_branch
      %56 = sbr.rel (0) target = $region21
    $region20: #{tpu_custom_call.1} parent=1 // pred_region
      %57 = dma.done [#allocation3], 256
    $region21: #{tpu_custom_call.1} parent=1 // pred_fallthru
      _
    // Predicated region
    $region22: #{tpu_custom_call.1} parent=1 // pred_check
      _
    $region23: #{tpu_custom_call.1} parent=1 // pred_check_branch
      %59 = sbr.rel (0) target = $region25
    $region24: #{tpu_custom_call.1} parent=1 // pred_region
      %60 = dma.done [#allocation6], 128
    $region25: #{tpu_custom_call.1} parent=1 // pred_fallthru
      _
    // Predicated region
    $region26: #{tpu_custom_call.1} parent=1 // pred_check
      _
    $region27: #{tpu_custom_call.1} parent=1 // pred_check_branch
      %62 = sbr.rel (0) target = $region29
    $region28: #{tpu_custom_call.1} parent=1 // pred_region
      %63 = dma.done [#allocation6], 128
    $region29: #{tpu_custom_call.1} parent=1 // pred_fallthru
      _
    // Predicated region
    $region30: #{tpu_custom_call.1} parent=1 // pred_check
      _
    $region31: #{tpu_custom_call.1} parent=1 // pred_check_branch
      %65 = sbr.rel (0) target = $region33
    $region32: #{tpu_custom_call.1} parent=1 // pred_region
      %66 = dma.done [#allocation9], 128
    $region33: #{tpu_custom_call.1} parent=1 // pred_fallthru
      _
    %v67 = vld [vmem:[#allocation2] sm:$0xff]
    %v68 = vld [vmem:[#allocation2 + $0x8] sm:$0xff]
    %vm69 = vcmask 1047808
    %70 = vrot.lane.b32.xlu0 %v67, 32
    %v71 = vpop.permute.xlu0 %70
    %v72 = vsel %vm69, %v71, %v67
    %73 = vrot.lane.b32.xlu0 %v68, 32
    %v74 = vpop.permute.xlu0 %73
    %v75 = vsel %vm69, %v74, %v68
    %76 = vrot.lane.b32.xlu0 %v72, 32
    %v77 = vpop.permute.xlu0 %76
    %78 = vrot.lane.b32.xlu0 %v75, 32
    %v79 = vpop.permute.xlu0 %78
    %v80 = vsel %vm69, %v77, %v67
    %v81 = vsel %vm69, %v79, %v68
    %v82 = vld [vmem:[#allocation5] sm:$0xff]
    %v83 = vld [vmem:[#allocation7] sm:$0xff]
    %v84 = vld [vmem:[#allocation8] sm:$0xff]
    %v85 = vmul.f32 %v67, %v82
    %v86 = vmul.f32 %v68, %v82
    %88 = vrot.lane.b32.xlu0 %v83, 1
    %v89 = vpop.permute.xlu0 %88
    %v91 = vmul.f32 %v80, %v89
    %v92 = vmul.f32 %v81, %v89
    %95 = vrot.lane.b32.xlu0 %v91, 127
    %v96 = vpop.permute.xlu0 %95
    %97 = vrot.lane.b32.xlu0 %v92, 127
    %v98 = vpop.permute.xlu0 %97
    %v101 = vadd.f32 %v85, %v96
    %v102 = vadd.f32 %v86, %v98
    %104 = vrot.lane.b32.xlu0 %v84, 31
    %v105 = vpop.permute.xlu0 %104
    %v107 = vmul.f32 %v80, %v105
    %v108 = vmul.f32 %v81, %v105
    %111 = vrot.lane.b32.xlu0 %v107, 97
    %v112 = vpop.permute.xlu0 %111
    %113 = vrot.lane.b32.xlu0 %v108, 97
    %v114 = vpop.permute.xlu0 %113
    %v117 = vadd.f32 %v101, %v112
    %v118 = vadd.f32 %v102, %v114
    %vm119 = vcmask 261120
    %120 = vst.msk [vmem:[#allocation10] sm:$0xff] %vm119, %v117
    %121 = vst.msk [vmem:[#allocation10 + $0x8] sm:$0xff] %vm119, %v118
    // Predicated region
    $region34: #{tpu_custom_call.1} parent=1 // pred_check
      _
    $region35: #{tpu_custom_call.1} parent=1 // pred_check_branch
      %123 = sbr.rel (0) target = $region37
    $region36: #{tpu_custom_call.1} parent=1 // pred_region
      %s125 = ssub.s32 256, 256
      %126 = vsyncadd [#allocation4], %s125
      %s127 = sshll.u32 [#allocation10], 4
      %s128 = int_to_ptr.vmem [resolvable:$true] %s127
      %133 = dma.vmem_to_hbm [thread:$0]  %s128, 256, %s4, [#allocation4], 128, 128, 8
    $region37: #{tpu_custom_call.1} parent=1 // pred_fallthru
      _
    // Predicated region
    $region38: #{tpu_custom_call.1} parent=1 // pred_check
      _
    $region39: #{tpu_custom_call.1} parent=1 // pred_check_branch
      %135 = sbr.rel (0) target = $region41
    $region40: #{tpu_custom_call.1} parent=1 // pred_region
      %136 = dma.done [#allocation4], 256
    $region41: #{tpu_custom_call.1} parent=1 // pred_fallthru
      _
    %137 = vsyncpa [#allocation3], 1
    %138 = vsyncpa [#allocation6], 1
    %139 = vsyncpa [#allocation9], 1
    %140 = vsyncpa [#allocation4], 1

</llo_original>
